<compile_context>
chip_gen: v5e
topology: v5e:2x2
jax: 0.10.0
libtpu: 0.0.40
codegen_flags: <defaults>
</compile_context>

<pallas_src>
import functools

import jax
import jax.numpy as jnp
import numpy as np
from jax import lax
from jax.experimental import pallas as pl
from jax.experimental.pallas import tpu as pltpu

NEG_SLOPE = 0.2  # LeakyReLU slope


def _leaky_relu(x):
    return jnp.where(x > 0, x, NEG_SLOPE * x)


def _decoder_block_kernel(x_ref, w1_ref, w2_ref, out_ref, apad_ref, *,
                          T, K, num_layers, dilation_factor, pad_max,
                          compute_dtype):
    """Fused DecoderBlock (all residual layers) for one batch element, NCW.

    x_ref   : (1, C, T)          input (channels on sublanes, time on lanes)
    w1_ref  : (L, C, K*C)        im2col-stacked dilated conv weights per layer,
                                 w1s[l, co, k*C + ci] = w1[l][k, ci, co]
    w2_ref  : (L, C, C)          transposed 1x1 conv weights per layer (w2.T)
    out_ref : (1, C, T)
    apad_ref: (C, T + 2*pad_max) zero-padded activation scratch (VMEM)
    """
    x = x_ref[0].astype(jnp.float32)                    # (C, T) residual, f32

    # Zero the halo scratch once per grid step; only [pad_max : pad_max+T] is
    # ever overwritten, so the edges stay zero for every layer
    # (LeakyReLU(0) == 0, matching a zero-padded conv input).
    apad_ref[...] = jnp.zeros_like(apad_ref)

    for layer in range(num_layers):                     # static unroll (L = 2)
        d = dilation_factor ** layer
        p = (K - 1) * d // 2                            # 'same' pad (odd K)

        a = _leaky_relu(x)                              # (C, T) f32
        apad_ref[:, pad_max:pad_max + T] = a
        ap = apad_ref[...]                              # (C, T + 2*pad_max)

        # im2col: stack the K dilated taps along channels -> (K*C, T), then a
        # single MXU matmul (contraction dim K*C instead of C per tap).
        taps = jnp.concatenate(
            [ap[:, pad_max - p + k * d: pad_max - p + k * d + T]
             for k in range(K)], axis=0)

        h = jnp.dot(w1_ref[layer].astype(compute_dtype),
                    taps.astype(compute_dtype),
                    preferred_element_type=jnp.float32)  # (C, T), f32 acc

        a2 = _leaky_relu(h)                              # f32 (v5e-safe VPU)
        y = jnp.dot(w2_ref[layer].astype(compute_dtype),
                    a2.astype(compute_dtype),
                    preferred_element_type=jnp.float32)  # (C, T)

        x = x + y                                        # residual, f32

    out_ref[0] = x.astype(out_ref.dtype)


def decoder_block(x_bct, params, dilation_factor=3,
                  compute_dtype=jnp.float32):
    """Forward of DecoderBlock.  Input/output in PyTorch NCW = (B, C, T)."""
    B, C, T = x_bct.shape
    L = len(params)
    K = params[0][0].shape[0]
    max_dil = dilation_factor ** (L - 1)
    pad_max = (K - 1) * max_dil // 2                    # only exact for odd K
    Tp = T + 2 * pad_max

    # Pre-stack weights for the im2col matmul (done once, outside the kernel):
    #   W1[l, co, k*C + ci] = w1[l][k, ci, co]  -> (L, C, K*C)
    #   W2[l]               = w2[l].T           -> (L, C, C)
    W1 = jnp.stack([jnp.transpose(w1, (2, 0, 1)).reshape(C, K * C)
                    for (w1, _) in params]).astype(compute_dtype)
    W2 = jnp.stack([w2.T for (_, w2) in params]).astype(compute_dtype)

    kernel = functools.partial(
        _decoder_block_kernel, T=T, K=K, num_layers=L,
        dilation_factor=dilation_factor, pad_max=pad_max,
        compute_dtype=compute_dtype)

    return pl.pallas_call(
        kernel,
        out_shape=jax.ShapeDtypeStruct((B, C, T), x_bct.dtype),
        grid_spec=pltpu.PrefetchScalarGridSpec(
            num_scalar_prefetch=0,
            grid=(B,),
            in_specs=[
                pl.BlockSpec((1, C, T), lambda b: (b, 0, 0)),
                # Constant index_maps: weights DMA'd once, not per grid step.
                pl.BlockSpec((L, C, K * C), lambda b: (0, 0, 0)),
                pl.BlockSpec((L, C, C), lambda b: (0, 0, 0)),
            ],
            out_specs=pl.BlockSpec((1, C, T), lambda b: (b, 0, 0)),
            scratch_shapes=[pltpu.VMEM((C, Tp), jnp.float32)],
        ),
        compiler_params=pltpu.CompilerParams(
            dimension_semantics=("parallel",),   # megacore: one batch per TC
            vmem_limit_bytes=32 * 1024 * 1024,
        ),
    )(x_bct, W1, W2)


def init_decoder_block_params(key, channels, kernel, num_layers=2):
    """Deterministic synthetic weights.

    Per layer: (w1: (K, Cin, Cout) dilated conv, w2: (Cin, Cout) 1x1 conv).
    weight_norm at PyTorch init is an identity reparametrization, so the
    effective weights are just these tensors.  bias=False -> no biases.
    """
    params = []
    for _ in range(num_layers):
        key, k1, k2 = jax.random.split(key, 3)
        w1 = jax.random.normal(k1, (kernel, channels, channels), jnp.float32)
        w1 = w1 / np.sqrt(channels * kernel)
        w2 = jax.random.normal(k2, (channels, channels), jnp.float32)
        w2 = w2 / np.sqrt(channels)
        params.append((w1, w2))
    return params


def decoder_block_ref(x_bct, params, dilation_factor=3):
    """Pure-JAX reference (lax.conv) for correctness checking."""
    x = jnp.transpose(x_bct, (0, 2, 1))
    for i, (w1, w2) in enumerate(params):
        d = dilation_factor ** i
        K = w1.shape[0]
        pad = (K - 1) * d // 2
        a = jnp.where(x > 0, x, NEG_SLOPE * x)
        h = lax.conv_general_dilated(
            a, w1, window_strides=(1,), padding=[(pad, pad)],
            rhs_dilation=(d,), dimension_numbers=("NWC", "WIO", "NWC"))
        a2 = jnp.where(h > 0, h, NEG_SLOPE * h)
        y = jnp.einsum("btc,cd->btd", a2, w2)
        x = x + y
    return jnp.transpose(x, (0, 2, 1))


if __name__ == "__main__":
    B, C, T = 2, 32, 64          # batch, channels, sequence length (NCW)
    KERNEL = 3
    NUM_LAYERS = 2
    DILATION_FACTOR = 3

    key = jax.random.PRNGKey(0)
    key, kx = jax.random.split(key)
    x = jax.random.normal(kx, (B, C, T), jnp.float32)   # PyTorch NCW layout

    params = init_decoder_block_params(key, C, KERNEL, NUM_LAYERS)

    ref = jax.block_until_ready(decoder_block_ref(x, params, DILATION_FACTOR))

    # f32 path (tight check, all chips).
    out = jax.block_until_ready(decoder_block(x, params, DILATION_FACTOR))
    np.testing.assert_allclose(np.asarray(out), np.asarray(ref),
                               rtol=1e-5, atol=5e-5)
    assert out.shape == (B, C, T) and out.dtype == jnp.float32

    # bf16 matmul path (v6e/v7x HBM/MXU win): looser tolerance vs f32 ref.
    out_bf16 = jax.block_until_ready(
        decoder_block(x, params, DILATION_FACTOR, compute_dtype=jnp.bfloat16))
    np.testing.assert_allclose(np.asarray(out_bf16), np.asarray(ref),
                               rtol=5e-2, atol=5e-2)

    print("KERNEL_OK")
</pallas_src>

<mosaic_0001>
module attributes {stable_mosaic.version = 11 : i64} {
  func.func @_decoder_block_kernel(%arg0: i32, %arg1: memref<1x32x64xf32, #tpu.memory_space<vmem>>, %arg2: memref<2x32x96xf32, #tpu.memory_space<vmem>>, %arg3: memref<2x32x32xf32, #tpu.memory_space<vmem>>, %arg4: memref<1x32x64xf32, #tpu.memory_space<vmem>>, %arg5: memref<32x70xf32, #tpu.memory_space<vmem>>) attributes {dimension_semantics = [#tpu.dimension_semantics<parallel>], iteration_bounds = array<i64: 2>, scalar_prefetch = 0 : i64, scratch_operands = 1 : i64, tpu.core_type = #tpu.core_type<tc>, window_params = [{transform_indices = @transform_0, window_bounds = array<i64: 1, 32, 64>}, {pipeline_mode = #tpu.pipeline_mode<synchronous>, transform_indices = @transform_1, window_bounds = array<i64: 2, 32, 96>}, {pipeline_mode = #tpu.pipeline_mode<synchronous>, transform_indices = @transform_2, window_bounds = array<i64: 2, 32, 32>}, {transform_indices = @transform_3, window_bounds = array<i64: 1, 32, 64>}]} {
    %c0 = arith.constant 0 : index
    %c0_0 = arith.constant 0 : index
    %c0_1 = arith.constant 0 : index
    %0 = vector.load %arg1[%c0, %c0_0, %c0_1] : memref<1x32x64xf32, #tpu.memory_space<vmem>>, vector<1x32x64xf32>
    %1 = vector.shape_cast %0 : vector<1x32x64xf32> to vector<32x64xf32>
    %cst = arith.constant 0.000000e+00 : f32
    %2 = vector.broadcast %cst : f32 to vector<32x70xf32>
    %c0_2 = arith.constant 0 : index
    %c0_3 = arith.constant 0 : index
    %3 = vector.load %arg5[%c0_2, %c0_3] : memref<32x70xf32, #tpu.memory_space<vmem>>, vector<32x70xf32>
    tpu.vector_store %arg5[%c0_2, %c0_3], %2 {strides = array<i32>} : memref<32x70xf32, #tpu.memory_space<vmem>>, vector<32x70xf32>,
    %cst_4 = arith.constant 0.000000e+00 : f32
    %4 = vector.broadcast %cst_4 : f32 to vector<32x64xf32>
    %5 = arith.cmpf ogt, %1, %4 : vector<32x64xf32>
    %cst_5 = arith.constant 2.000000e-01 : f32
    %6 = vector.broadcast %cst_5 : f32 to vector<32x64xf32>
    %7 = arith.mulf %6, %1 : vector<32x64xf32>
    %8 = arith.select %5, %1, %7 : vector<32x64xi1>, vector<32x64xf32>
    %c0_6 = arith.constant 0 : index
    %c3 = arith.constant 3 : index
    %9 = vector.load %arg5[%c0_6, %c3] : memref<32x70xf32, #tpu.memory_space<vmem>>, vector<32x64xf32>
    tpu.vector_store %arg5[%c0_6, %c3], %8 {strides = array<i32>} : memref<32x70xf32, #tpu.memory_space<vmem>>, vector<32x64xf32>,
    %c0_7 = arith.constant 0 : index
    %c0_8 = arith.constant 0 : index
    %10 = vector.load %arg5[%c0_7, %c0_8] : memref<32x70xf32, #tpu.memory_space<vmem>>, vector<32x70xf32>
    %11 = vector.extract_strided_slice %10 {offsets = [0, 2], sizes = [32, 64], strides = [1, 1]} : vector<32x70xf32> to vector<32x64xf32>
    %12 = vector.extract_strided_slice %10 {offsets = [0, 3], sizes = [32, 64], strides = [1, 1]} : vector<32x70xf32> to vector<32x64xf32>
    %13 = vector.extract_strided_slice %10 {offsets = [0, 4], sizes = [32, 64], strides = [1, 1]} : vector<32x70xf32> to vector<32x64xf32>
    %14 = tpu.concatenate %11, %12, %13 in 0 : vector<32x64xf32>, vector<32x64xf32>, vector<32x64xf32> -> vector<96x64xf32>
    %c0_9 = arith.constant 0 : index
    %c0_10 = arith.constant 0 : index
    %c0_11 = arith.constant 0 : index
    %15 = vector.load %arg2[%c0_9, %c0_10, %c0_11] : memref<2x32x96xf32, #tpu.memory_space<vmem>>, vector<1x32x96xf32>
    %16 = vector.shape_cast %15 : vector<1x32x96xf32> to vector<32x96xf32>
    %cst_12 = arith.constant dense<0.000000e+00> : vector<32x64xf32>
    %17 = tpu.matmul %16, %14, %cst_12 {dimension_numbers = #tpu.dot_dimension_numbers<[1], [0], [0], [1], [0, 0, 1, 1], [], []>} : vector<32x96xf32>, vector<96x64xf32>, vector<32x64xf32> -> vector<32x64xf32>
    %cst_13 = arith.constant 0.000000e+00 : f32
    %18 = vector.broadcast %cst_13 : f32 to vector<32x64xf32>
    %19 = arith.cmpf ogt, %17, %18 : vector<32x64xf32>
    %cst_14 = arith.constant 2.000000e-01 : f32
    %20 = vector.broadcast %cst_14 : f32 to vector<32x64xf32>
    %21 = arith.mulf %20, %17 : vector<32x64xf32>
    %22 = arith.select %19, %17, %21 : vector<32x64xi1>, vector<32x64xf32>
    %c0_15 = arith.constant 0 : index
    %c0_16 = arith.constant 0 : index
    %c0_17 = arith.constant 0 : index
    %23 = vector.load %arg3[%c0_15, %c0_16, %c0_17] : memref<2x32x32xf32, #tpu.memory_space<vmem>>, vector<1x32x32xf32>
    %24 = vector.shape_cast %23 : vector<1x32x32xf32> to vector<32x32xf32>
    %cst_18 = arith.constant dense<0.000000e+00> : vector<32x64xf32>
    %25 = tpu.matmul %24, %22, %cst_18 {dimension_numbers = #tpu.dot_dimension_numbers<[1], [0], [0], [1], [0, 0, 1, 1], [], []>} : vector<32x32xf32>, vector<32x64xf32>, vector<32x64xf32> -> vector<32x64xf32>
    %26 = arith.addf %1, %25 : vector<32x64xf32>
    %cst_19 = arith.constant 0.000000e+00 : f32
    %27 = vector.broadcast %cst_19 : f32 to vector<32x64xf32>
    %28 = arith.cmpf ogt, %26, %27 : vector<32x64xf32>
    %cst_20 = arith.constant 2.000000e-01 : f32
    %29 = vector.broadcast %cst_20 : f32 to vector<32x64xf32>
    %30 = arith.mulf %29, %26 : vector<32x64xf32>
    %31 = arith.select %28, %26, %30 : vector<32x64xi1>, vector<32x64xf32>
    %c0_21 = arith.constant 0 : index
    %c3_22 = arith.constant 3 : index
    %32 = vector.load %arg5[%c0_21, %c3_22] : memref<32x70xf32, #tpu.memory_space<vmem>>, vector<32x64xf32>
    tpu.vector_store %arg5[%c0_21, %c3_22], %31 {strides = array<i32>} : memref<32x70xf32, #tpu.memory_space<vmem>>, vector<32x64xf32>,
    %c0_23 = arith.constant 0 : index
    %c0_24 = arith.constant 0 : index
    %33 = vector.load %arg5[%c0_23, %c0_24] : memref<32x70xf32, #tpu.memory_space<vmem>>, vector<32x70xf32>
    %34 = vector.extract_strided_slice %33 {offsets = [0, 0], sizes = [32, 64], strides = [1, 1]} : vector<32x70xf32> to vector<32x64xf32>
    %35 = vector.extract_strided_slice %33 {offsets = [0, 3], sizes = [32, 64], strides = [1, 1]} : vector<32x70xf32> to vector<32x64xf32>
    %36 = vector.extract_strided_slice %33 {offsets = [0, 6], sizes = [32, 64], strides = [1, 1]} : vector<32x70xf32> to vector<32x64xf32>
    %37 = tpu.concatenate %34, %35, %36 in 0 : vector<32x64xf32>, vector<32x64xf32>, vector<32x64xf32> -> vector<96x64xf32>
    %c1 = arith.constant 1 : index
    %c0_25 = arith.constant 0 : index
    %c0_26 = arith.constant 0 : index
    %38 = vector.load %arg2[%c1, %c0_25, %c0_26] : memref<2x32x96xf32, #tpu.memory_space<vmem>>, vector<1x32x96xf32>
    %39 = vector.shape_cast %38 : vector<1x32x96xf32> to vector<32x96xf32>
    %cst_27 = arith.constant dense<0.000000e+00> : vector<32x64xf32>
    %40 = tpu.matmul %39, %37, %cst_27 {dimension_numbers = #tpu.dot_dimension_numbers<[1], [0], [0], [1], [0, 0, 1, 1], [], []>} : vector<32x96xf32>, vector<96x64xf32>, vector<32x64xf32> -> vector<32x64xf32>
    %cst_28 = arith.constant 0.000000e+00 : f32
    %41 = vector.broadcast %cst_28 : f32 to vector<32x64xf32>
    %42 = arith.cmpf ogt, %40, %41 : vector<32x64xf32>
    %cst_29 = arith.constant 2.000000e-01 : f32
    %43 = vector.broadcast %cst_29 : f32 to vector<32x64xf32>
    %44 = arith.mulf %43, %40 : vector<32x64xf32>
    %45 = arith.select %42, %40, %44 : vector<32x64xi1>, vector<32x64xf32>
    %c1_30 = arith.constant 1 : index
    %c0_31 = arith.constant 0 : index
    %c0_32 = arith.constant 0 : index
    %46 = vector.load %arg3[%c1_30, %c0_31, %c0_32] : memref<2x32x32xf32, #tpu.memory_space<vmem>>, vector<1x32x32xf32>
    %47 = vector.shape_cast %46 : vector<1x32x32xf32> to vector<32x32xf32>
    %cst_33 = arith.constant dense<0.000000e+00> : vector<32x64xf32>
    %48 = tpu.matmul %47, %45, %cst_33 {dimension_numbers = #tpu.dot_dimension_numbers<[1], [0], [0], [1], [0, 0, 1, 1], [], []>} : vector<32x32xf32>, vector<32x64xf32>, vector<32x64xf32> -> vector<32x64xf32>
    %49 = arith.addf %26, %48 : vector<32x64xf32>
    %c0_34 = arith.constant 0 : index
    %c0_35 = arith.constant 0 : index
    %c0_36 = arith.constant 0 : index
    %50 = vector.load %arg4[%c0_34, %c0_35, %c0_36] : memref<1x32x64xf32, #tpu.memory_space<vmem>>, vector<1x32x64xf32>
    %51 = vector.shape_cast %50 : vector<1x32x64xf32> to vector<32x64xf32>
    %52 = vector.shape_cast %49 : vector<32x64xf32> to vector<1x32x64xf32>
    tpu.vector_store %arg4[%c0_34, %c0_35, %c0_36], %52 {strides = array<i32>} : memref<1x32x64xf32, #tpu.memory_space<vmem>>, vector<1x32x64xf32>,
    return
  }
  func.func @transform_0(%arg0: i32) -> (i32, i32, i32) {
    %c0_i32 = arith.constant 0 : i32
    %c0_i32_0 = arith.constant 0 : i32
    %c0_i32_1 = arith.constant 0 : i32
    return %arg0, %c0_i32, %c0_i32_0 : i32, i32, i32
  }
  func.func @transform_1(%arg0: i32) -> (i32, i32, i32) {
    %c0_i32 = arith.constant 0 : i32
    %c0_i32_0 = arith.constant 0 : i32
    %c0_i32_1 = arith.constant 0 : i32
    %c0_i32_2 = arith.constant 0 : i32
    return %c0_i32, %c0_i32_0, %c0_i32_1 : i32, i32, i32
  }
  func.func @transform_2(%arg0: i32) -> (i32, i32, i32) {
    %c0_i32 = arith.constant 0 : i32
    %c0_i32_0 = arith.constant 0 : i32
    %c0_i32_1 = arith.constant 0 : i32
    %c0_i32_2 = arith.constant 0 : i32
    return %c0_i32, %c0_i32_0, %c0_i32_1 : i32, i32, i32
  }
  func.func @transform_3(%arg0: i32) -> (i32, i32, i32) {
    %c0_i32 = arith.constant 0 : i32
    %c0_i32_0 = arith.constant 0 : i32
    %c0_i32_1 = arith.constant 0 : i32
    return %arg0, %c0_i32, %c0_i32_0 : i32, i32, i32
  }
}

</mosaic_0001>

<llo_original>
// kernel: tpu_custom_call.1
$region0: #{tpu_custom_call.1}
  #allocation0 [shape = 'u32[]', space=smem, size = 0x4, offset = 0x4, fixed_abs, tag = 'smem constant byte address 0x4 - core index']
  #allocation1 [shape = 'u32[72,128]{1,0:T(1,128)}', space=vmem, size = 0x9000, scoped, tag = 'internal scratch']
  #allocation2 [shape = 'f32[32,70]{1,0:T(8,128)}', space=vmem, size = 0x4000, scoped, tag = 'scratch operand']
  %s0 = inlined_call_operand.hbm [shape: f32[2,32,64], index: 0, kind: input, shape index: {}]
  %s1 = inlined_call_operand.hbm [shape: f32[2,32,96], index: 1, kind: input, shape index: {}]
  %s2 = inlined_call_operand.hbm [shape: f32[2,32,32], index: 2, kind: input, shape index: {}]
  %s3 = inlined_call_operand.hbm [shape: f32[2,32,64], index: 3, kind: output, shape index: {}]
  %s4 = sld [smem:[#allocation0]]
  $region57: #{tpu_custom_call.1} parent=0
    _
  %s6 = ssub.s32 1, %s4
  %s7 = scalar_select 0, %s6, %s4
  $region1: #{tpu_custom_call.1} parent=0
    #allocation3 [shape = 'u8[32768]{0}', space=vmem, size = 0x8000, scoped, tag = 'input window, operand 0']
    #allocation4 [shape = 's32[2]{0}', space=sflag, size = 0x8, scoped, tag = 'scoped memory for tpu_custom_call.1']
    #allocation5 [shape = 's32[2]{0}', space=sflag, size = 0x8, scoped, tag = 'scoped memory for tpu_custom_call.1']
    #allocation6 [shape = 'u8[32768]{0}', space=vmem, size = 0x8000, scoped, tag = 'input window, operand 1, single buffered']
    #allocation7 [shape = 's32[1]{0}', space=sflag, size = 0x4, scoped, tag = 'scoped memory for tpu_custom_call.1']
    #allocation8 [shape = 'u8[32768]{0}', space=vmem, size = 0x8000, scoped, tag = 'input window, operand 2, single buffered']
    #allocation9 [shape = 'u8[32768]{0}', space=vmem, size = 0x8000, scoped, tag = 'output window, operand 0']
    %8 = vsyncpa [#allocation4], 0
    %s9 = scalar_lea.sflag [#allocation4], 1
    %10 = vsyncpa %s9, 0
    %11 = vsyncpa [#allocation7], 0
    %12 = vsyncpa [#allocation5], 0
    %s13 = scalar_lea.sflag [#allocation5], 1
    %14 = vsyncpa %s13, 0
    loop: start=0, step=1, limit=4
    $region2: #{tpu_custom_call.1} parent=1 // loop_pre_header
      _
    $region3: #{tpu_custom_call.1} parent=1 // loop_header
      %s16 = sphi 0, %s20
      %p17 = scmp.ge.s32.totalorder %s16, 4
      %s26 = sphi 0, %s28
      %s29 = sphi 0, %s26
      %s30 = sphi 0, %s29
      %s46 = sphi 0, %s30
      %s50 = sphi 0, %s50
      %s52 = sphi 0, %s50
      %s53 = sphi 0, %s52
      %s67 = sphi 0, %s53
      %s71 = sphi 0, %s71
      %s73 = sphi 0, %s71
      %s74 = sphi 0, %s73
      %s88 = sphi 0, %s74
      %s94 = sphi 0, %s96
      %s97 = sphi 0, %s94
      %s98 = sphi 0, %s97
      %s114 = sphi 0, %s98
    $region4: #{tpu_custom_call.1} parent=1 // loop_header_branch
      %19 = sbr.rel (%p17) target = $region8
    $region5: #{tpu_custom_call.1} parent=1 // loop_body
      %s21 = ssub.s32 %s16, 1
      %s22 = ssub.s32 %s16, 2
      %s23 = sadd.s32 %s16, 1
      %s24 = ssub.s32 %s16, %s23
      %p25 = scmp.eq.s32.totalorder %s24, 0
      %s27 = sadd.s32 %s26, 1
      %s28 = scalar_select %p25, %s26, %s27
      %p31 = pneg %p25
      %p32 = scmp.eq.s32.totalorder %s16, 1
      %p33 = por %p31, %p32
      %p34 = scmp.ne.s32.totalorder %s26, %s29
      %p35 = scmp.eq.s32.totalorder %s16, 0
      %p36 = por %p34, %p35
      %p37 = scmp.ne.s32.totalorder %s26, %s29
      %p38 = scmp.eq.s32.totalorder %s21, 1
      %p39 = por %p37, %p38
      %p40 = scmp.ne.s32.totalorder %s29, %s30
      %p41 = scmp.eq.s32.totalorder %s21, 0
      %p42 = por %p40, %p41
      %p43 = scmp.ne.s32.totalorder %s29, %s30
      %p44 = scmp.eq.s32.totalorder %s22, 1
      %p45 = por %p43, %p44
      %p47 = scmp.ne.s32.totalorder %s30, %s46
      %p48 = scmp.eq.s32.totalorder %s22, 0
      %p49 = por %p47, %p48
      %s51 = sadd.s32 %s50, 1
      %p54 = scmp.eq.s32.totalorder %s16, 1
      %p55 = scmp.ne.s32.totalorder %s50, %s52
      %p56 = scmp.eq.s32.totalorder %s16, 0
      %p57 = por %p55, %p56
      %p58 = scmp.ne.s32.totalorder %s50, %s52
      %p59 = scmp.eq.s32.totalorder %s21, 1
      %p60 = por %p58, %p59
      %p61 = scmp.ne.s32.totalorder %s52, %s53
      %p62 = scmp.eq.s32.totalorder %s21, 0
      %p63 = por %p61, %p62
      %p64 = scmp.ne.s32.totalorder %s52, %s53
      %p65 = scmp.eq.s32.totalorder %s22, 1
      %p66 = por %p64, %p65
      %p68 = scmp.ne.s32.totalorder %s53, %s67
      %p69 = scmp.eq.s32.totalorder %s22, 0
      %p70 = por %p68, %p69
      %s72 = sadd.s32 %s71, 1
      %p75 = scmp.eq.s32.totalorder %s16, 1
      %p76 = scmp.ne.s32.totalorder %s71, %s73
      %p77 = scmp.eq.s32.totalorder %s16, 0
      %p78 = por %p76, %p77
      %p79 = scmp.ne.s32.totalorder %s71, %s73
      %p80 = scmp.eq.s32.totalorder %s21, 1
      %p81 = por %p79, %p80
      %p82 = scmp.ne.s32.totalorder %s73, %s74
      %p83 = scmp.eq.s32.totalorder %s21, 0
      %p84 = por %p82, %p83
      %p85 = scmp.ne.s32.totalorder %s73, %s74
      %p86 = scmp.eq.s32.totalorder %s22, 1
      %p87 = por %p85, %p86
      %p89 = scmp.ne.s32.totalorder %s74, %s88
      %p90 = scmp.eq.s32.totalorder %s22, 0
      %p91 = por %p89, %p90
      %s92 = ssub.s32 %s16, %s23
      %p93 = scmp.eq.s32.totalorder %s92, 0
      %s95 = sadd.s32 %s94, 1
      %s96 = scalar_select %p93, %s94, %s95
      %p99 = pneg %p93
      %p100 = scmp.eq.s32.totalorder %s16, 1
      %p101 = por %p99, %p100
      %p102 = scmp.ne.s32.totalorder %s94, %s97
      %p103 = scmp.eq.s32.totalorder %s16, 0
      %p104 = por %p102, %p103
      %p105 = scmp.ne.s32.totalorder %s94, %s97
      %p106 = scmp.eq.s32.totalorder %s21, 1
      %p107 = por %p105, %p106
      %p108 = scmp.ne.s32.totalorder %s97, %s98
      %p109 = scmp.eq.s32.totalorder %s21, 0
      %p110 = por %p108, %p109
      %p111 = scmp.ne.s32.totalorder %s97, %s98
      %p112 = scmp.eq.s32.totalorder %s22, 1
      %p113 = por %p111, %p112
      %p115 = scmp.ne.s32.totalorder %s98, %s114
      %p116 = scmp.eq.s32.totalorder %s22, 0
      %p117 = por %p115, %p116
      %p118 = scmp.le.s32.totalorder 1, %s16
      %p119 = scmp.lt.s32.totalorder %s16, 3
      %p120 = pnand %p118, %p119
      %p121 = pneg %p120
      // Predicated region
      $region9: #{tpu_custom_call.1} parent=5 // pred_check
        _
      $region10: #{tpu_custom_call.1} parent=5 // pred_check_branch
        %123 = sbr.rel (%p120) target = $region12
      $region11: #{tpu_custom_call.1} parent=5 // pred_region
        %s124 = ssub.s32 %s16, 1
        // Predicated region
        $region13: #{tpu_custom_call.1} parent=11 // pred_check
          %p125 = pneg %p63
        $region14: #{tpu_custom_call.1} parent=11 // pred_check_branch
          %127 = sbr.rel (%p125) target = $region16
        $region15: #{tpu_custom_call.1} parent=11 // pred_region
          %129 = vsyncadd [#allocation7], 0
          %s130 = sshll.u32 %s1, 4
          %s131 = int_to_ptr.hbm [resolvable:$true] %s130
          %s132 = sshll.u32 [#allocation6], 4
          %s133 = int_to_ptr.vmem [resolvable:$true] %s132
          %138 = dma.hbm_to_vmem [thread:$0]  %s131, 1024, %s133, [#allocation7], 128, 128, 8
        $region16: #{tpu_custom_call.1} parent=11 // pred_fallthru
          _
        // Predicated region
        $region17: #{tpu_custom_call.1} parent=11 // pred_check
          %p139 = pneg %p84
        $region18: #{tpu_custom_call.1} parent=11 // pred_check_branch
          %141 = sbr.rel (%p139) target = $region20
        $region19: #{tpu_custom_call.1} parent=11 // pred_region
          %143 = vsyncadd [#allocation7], 0
          %s144 = sshll.u32 %s2, 4
          %s145 = int_to_ptr.hbm [resolvable:$true] %s144
          %s146 = sshll.u32 [#allocation8], 4
          %s147 = int_to_ptr.vmem [resolvable:$true] %s146
          %152 = dma.hbm_to_vmem [thread:$0]  %s145, 1024, %s147, [#allocation7], 128, 128, 8
        $region20: #{tpu_custom_call.1} parent=11 // pred_fallthru
          _
      $region12: #{tpu_custom_call.1} parent=5 // pred_fallthru
        _
      %p153 = scmp.lt.s32.totalorder %s16, 2
      // Predicated region
      $region21: #{tpu_custom_call.1} parent=5 // pred_check
        %p154 = pneg %p153
      $region22: #{tpu_custom_call.1} parent=5 // pred_check_branch
        %156 = sbr.rel (%p154) target = $region24
      $region23: #{tpu_custom_call.1} parent=5 // pred_region
        // Predicated region
        $region25: #{tpu_custom_call.1} parent=23 // pred_check
          %p157 = pneg %p36
        $region26: #{tpu_custom_call.1} parent=23 // pred_check_branch
          %159 = sbr.rel (%p157) target = $region28
        $region27: #{tpu_custom_call.1} parent=23 // pred_region
          %s160 = sand.u32 %s26, 1
          %s161 = scalar_lea.sflag [#allocation4], %s160
          %s162 = sand.u32 %s26, 1
          %s163 = smul.addr %s162, 32
          %s164 = scalar_lea.vmem [#allocation3], %s163
          %166 = vsyncadd %s161, 0
          %s167 = smul.addr %s16, 4
          %s168 = smul.addr %s167, 8
          %s169 = scalar_lea.hbm %s0, %s168
          %s170 = sshll.u32 %s169, 4
          %s171 = int_to_ptr.hbm [resolvable:$true] %s170
          %s172 = sshll.u32 %s164, 4
          %s173 = int_to_ptr.vmem [resolvable:$true] %s172
          %178 = dma.hbm_to_vmem [thread:$0]  %s171, 512, %s173, %s161, 128, 128, 8
        $region28: #{tpu_custom_call.1} parent=23 // pred_fallthru
          _
      $region24: #{tpu_custom_call.1} parent=5 // pred_fallthru
        _
      %p179 = scmp.le.s32.totalorder 1, %s16
      %p180 = scmp.lt.s32.totalorder %s16, 3
      %p181 = pnand %p179, %p180
      %p182 = pneg %p181
      // Predicated region
      $region29: #{tpu_custom_call.1} parent=5 // pred_check
        _
      $region30: #{tpu_custom_call.1} parent=5 // pred_check_branch
        %184 = sbr.rel (%p181) target = $region32
      $region31: #{tpu_custom_call.1} parent=5 // pred_region
        %s185 = ssub.s32 %s16, 1
        %s186 = sand.u32 %s29, 1
        %s187 = scalar_lea.sflag [#allocation4], %s186
        %s188 = sand.u32 %s29, 1
        %s189 = smul.addr %s188, 32
        %s190 = scalar_lea.vmem [#allocation3], %s189
        // Predicated region
        $region33: #{tpu_custom_call.1} parent=31 // pred_check
          %p191 = pneg %p42
        $region34: #{tpu_custom_call.1} parent=31 // pred_check_branch
          %193 = sbr.rel (%p191) target = $region36
        $region35: #{tpu_custom_call.1} parent=31 // pred_region
          %195 = dma.done %s187, 512
        $region36: #{tpu_custom_call.1} parent=31 // pred_fallthru
          _
        // Predicated region
        $region37: #{tpu_custom_call.1} parent=31 // pred_check
          %p196 = pneg %p63
        $region38: #{tpu_custom_call.1} parent=31 // pred_check_branch
          %198 = sbr.rel (%p196) target = $region40
        $region39: #{tpu_custom_call.1} parent=31 // pred_region
          %200 = dma.done [#allocation7], 1024
        $region40: #{tpu_custom_call.1} parent=31 // pred_fallthru
          _
        // Predicated region
        $region41: #{tpu_custom_call.1} parent=31 // pred_check
          %p201 = pneg %p84
        $region42: #{tpu_custom_call.1} parent=31 // pred_check_branch
          %203 = sbr.rel (%p201) target = $region44
        $region43: #{tpu_custom_call.1} parent=31 // pred_region
          %205 = dma.done [#allocation7], 1024
        $region44: #{tpu_custom_call.1} parent=31 // pred_fallthru
          _
        %s206 = sand.u32 %s29, 1
        %s207 = scalar_lea.sflag [#allocation4], %s206
        %s208 = sand.u32 %s29, 1
        %s209 = smul.addr %s208, 32
        %s210 = scalar_lea.vmem [#allocation3], %s209
        %p211 = pneg %p42
        %p212 = pneg %p39
        %p213 = pneg %p63
        %p214 = pneg %p60
        %p215 = pneg %p84
        %p216 = pneg %p81
        %p217 = pneg %p110
        %p218 = pneg %p107
        %s219 = sand.u32 %s97, 1
        %s220 = scalar_lea.sflag [#allocation5], %s219
        %s221 = sand.u32 %s97, 1
        %s222 = smul.addr %s221, 32
        %s223 = scalar_lea.vmem [#allocation9], %s222
        %v224 = vld [vmem:[%s190] sm:$0xff]
        %v225 = vld [vmem:[%s190 + $0x8] sm:$0xff]
        %v226 = vld [vmem:[%s190 + $0x10] sm:$0xff]
        %v227 = vld [vmem:[%s190 + $0x18] sm:$0xff]
        %vm228 = vcmask 572416
        %229 = vst.msk [vmem:[#allocation2] sm:$0xff] %vm228, 0.0
        %230 = vst.msk [vmem:[#allocation2 + $0x8] sm:$0xff] %vm228, 0.0
        %231 = vst.msk [vmem:[#allocation2 + $0x10] sm:$0xff] %vm228, 0.0
        %232 = vst.msk [vmem:[#allocation2 + $0x18] sm:$0xff] %vm228, 0.0
        %vm233 = vcmp.gt.f32.partialorder %v224, 0.0
        %vm234 = vcmp.gt.f32.partialorder %v225, 0.0
        %vm235 = vcmp.gt.f32.partialorder %v226, 0.0
        %vm236 = vcmp.gt.f32.partialorder %v227, 0.0
        %v237 = vmul.f32 %v224, 0.2
        %v238 = vmul.f32 %v225, 0.2
        %v239 = vmul.f32 %v226, 0.2
        %v240 = vmul.f32 %v227, 0.2
        %v241 = vsel %vm233, %v224, %v237
        %v242 = vsel %vm234, %v225, %v238
        %v243 = vsel %vm235, %v226, %v239
        %v244 = vsel %vm236, %v227, %v240
        %249 = vrot.lane.b32.xlu0 %v241, 3
        %v250 = vpop.permute.xlu0 %249
        %251 = vrot.lane.b32.xlu0 %v242, 3
        %v252 = vpop.permute.xlu0 %251
        %253 = vrot.lane.b32.xlu0 %v243, 3
        %v254 = vpop.permute.xlu0 %253
        %255 = vrot.lane.b32.xlu0 %v244, 3
        %v256 = vpop.permute.xlu0 %255
        %vm261 = vcmask 547864
        %262 = vst.msk [vmem:[#allocation2] sm:$0xff] %vm261, %v250
        %263 = vst.msk [vmem:[#allocation2 + $0x8] sm:$0xff] %vm261, %v252
        %264 = vst.msk [vmem:[#allocation2 + $0x10] sm:$0xff] %vm261, %v254
        %265 = vst.msk [vmem:[#allocation2 + $0x18] sm:$0xff] %vm261, %v256
        %v266 = vld [vmem:[#allocation2] sm:$0xff]
        %v267 = vld [vmem:[#allocation2 + $0x8] sm:$0xff]
        %v268 = vld [vmem:[#allocation2 + $0x10] sm:$0xff]
        %v269 = vld [vmem:[#allocation2 + $0x18] sm:$0xff]
        %274 = vrot.lane.b32.xlu0 %v266, 127
        %v275 = vpop.permute.xlu0 %274
        %276 = vrot.lane.b32.xlu0 %v267, 127
        %v277 = vpop.permute.xlu0 %276
        %278 = vrot.lane.b32.xlu0 %v268, 127
        %v279 = vpop.permute.xlu0 %278
        %280 = vrot.lane.b32.xlu0 %v269, 127
        %v281 = vpop.permute.xlu0 %280
        %282 = vrot.lane.b32.xlu0 %v266, 126
        %v283 = vpop.permute.xlu0 %282
        %284 = vrot.lane.b32.xlu0 %v267, 126
        %v285 = vpop.permute.xlu0 %284
        %286 = vrot.lane.b32.xlu0 %v268, 126
        %v287 = vpop.permute.xlu0 %286
        %288 = vrot.lane.b32.xlu0 %v269, 126
        %v289 = vpop.permute.xlu0 %288
        %v290 = vld [vmem:[#allocation6] sm:$0xff]
        %v291 = vld [vmem:[#allocation6 + $0x8] sm:$0xff]
        %v292 = vld [vmem:[#allocation6 + $0x10] sm:$0xff]
        %v293 = vld [vmem:[#allocation6 + $0x18] sm:$0xff]
        %294 = vrot.lane.b32.xlu0 %v275, 126
        %v295 = vpop.permute.xlu0 %294
        %296 = vrot.lane.b32.xlu0 %v277, 126
        %v297 = vpop.permute.xlu0 %296
        %298 = vrot.lane.b32.xlu0 %v279, 126
        %v299 = vpop.permute.xlu0 %298
        %300 = vrot.lane.b32.xlu0 %v281, 126
        %v301 = vpop.permute.xlu0 %300
        %302 = vrot.lane.b32.xlu0 %v283, 126
        %v303 = vpop.permute.xlu0 %302
        %304 = vrot.lane.b32.xlu0 %v285, 126
        %v305 = vpop.permute.xlu0 %304
        %306 = vrot.lane.b32.xlu0 %v287, 126
        %v307 = vpop.permute.xlu0 %306
        %308 = vrot.lane.b32.xlu0 %v289, 126
        %v309 = vpop.permute.xlu0 %308
        %vm322 = vcmask 785408
        %v324 = vsel %vm322, %v290, 0
        %v327 = vsel %vm322, %v291, 0
        %v330 = vsel %vm322, %v292, 0
        %v333 = vsel %vm322, %v293, 0
        %335 = vmatpush.msra.mxu0 0.0
        %336 = vmatpush.msra.mxu0 0.0
        %337 = vmatpush.msra.mxu0 0.0
        %338 = vmatpush.msra.mxu0 0.0
        %339 = vmatpush.msra.mxu0 %v309
        %340 = vmatpush.msra.mxu0 %v307
        %341 = vmatpush.msra.mxu0 %v305
        %342 = vmatpush.msra.mxu0 %v303
        %343 = vmatpush.msra.mxu0 %v301
        %344 = vmatpush.msra.mxu0 %v299
        %345 = vmatpush.msra.mxu0 %v297
        %346 = vmatpush.msra.mxu0 %v295
        %347 = vmatpush.msra.mxu0 %v289
        %348 = vmatpush.msra.mxu0 %v287
        %349 = vmatpush.msra.mxu0 %v285
        %350 = vmatpush.msra.mxu0 %v283
        %351 = vmatmul.f32.gmra.mxu0 %v324
        %v352 = vpop.f32.mrf.mxu0
        %v353 = vadd.f32 0.0, %v352
        %354 = vmatmul.f32.gmra.mxu0 %v327
        %v355 = vpop.f32.mrf.mxu0
        %v356 = vadd.f32 0.0, %v355
        %357 = vmatmul.f32.gmra.mxu0 %v330
        %v358 = vpop.f32.mrf.mxu0
        %v359 = vadd.f32 0.0, %v358
        %360 = vmatmul.f32.gmra.mxu0 %v333
        %v361 = vpop.f32.mrf.mxu0
        %v362 = vadd.f32 0.0, %v361
        %363 = vdwg.mxu0
        %vm364 = vcmp.gt.f32.partialorder %v353, 0.0
        %vm365 = vcmp.gt.f32.partialorder %v356, 0.0
        %vm366 = vcmp.gt.f32.partialorder %v359, 0.0
        %vm367 = vcmp.gt.f32.partialorder %v362, 0.0
        %v368 = vmul.f32 %v353, 0.2
        %v369 = vmul.f32 %v356, 0.2
        %v370 = vmul.f32 %v359, 0.2
        %v371 = vmul.f32 %v362, 0.2
        %v372 = vsel %vm364, %v353, %v368
        %v373 = vsel %vm365, %v356, %v369
        %v374 = vsel %vm366, %v359, %v370
        %v375 = vsel %vm367, %v362, %v371
        %v376 = vld [vmem:[#allocation8] sm:$0xff]
        %v377 = vld [vmem:[#allocation8 + $0x8] sm:$0xff]
        %v378 = vld [vmem:[#allocation8 + $0x10] sm:$0xff]
        %v379 = vld [vmem:[#allocation8 + $0x18] sm:$0xff]
        %vm380 = vcmask 261120
        %v382 = vsel %vm380, %v376, 0
        %v385 = vsel %vm380, %v377, 0
        %v388 = vsel %vm380, %v378, 0
        %v391 = vsel %vm380, %v379, 0
        %393 = vmatpush.msra.mxu0 0.0
        %394 = vmatpush.msra.mxu0 0.0
        %395 = vmatpush.msra.mxu0 0.0
        %396 = vmatpush.msra.mxu0 0.0
        %397 = vmatpush.msra.mxu0 0.0
        %398 = vmatpush.msra.mxu0 0.0
        %399 = vmatpush.msra.mxu0 0.0
        %400 = vmatpush.msra.mxu0 0.0
        %401 = vmatpush.msra.mxu0 0.0
        %402 = vmatpush.msra.mxu0 0.0
        %403 = vmatpush.msra.mxu0 0.0
        %404 = vmatpush.msra.mxu0 0.0
        %405 = vmatpush.msra.mxu0 %v375
        %406 = vmatpush.msra.mxu0 %v374
        %407 = vmatpush.msra.mxu0 %v373
        %408 = vmatpush.msra.mxu0 %v372
        %409 = vmatmul.f32.gmra.mxu0 %v382
        %v410 = vpop.f32.mrf.mxu0
        %v411 = vadd.f32 0.0, %v410
        %412 = vmatmul.f32.gmra.mxu0 %v385
        %v413 = vpop.f32.mrf.mxu0
        %v414 = vadd.f32 0.0, %v413
        %415 = vmatmul.f32.gmra.mxu0 %v388
        %v416 = vpop.f32.mrf.mxu0
        %v417 = vadd.f32 0.0, %v416
        %418 = vmatmul.f32.gmra.mxu0 %v391
        %v419 = vpop.f32.mrf.mxu0
        %v420 = vadd.f32 0.0, %v419
        %421 = vdwg.mxu0
        %v422 = vadd.f32 %v224, %v411
        %v423 = vadd.f32 %v225, %v414
        %v424 = vadd.f32 %v226, %v417
        %v425 = vadd.f32 %v227, %v420
        %vm426 = vcmp.gt.f32.partialorder %v422, 0.0
        %vm427 = vcmp.gt.f32.partialorder %v423, 0.0
        %vm428 = vcmp.gt.f32.partialorder %v424, 0.0
        %vm429 = vcmp.gt.f32.partialorder %v425, 0.0
        %v430 = vmul.f32 %v422, 0.2
        %v431 = vmul.f32 %v423, 0.2
        %v432 = vmul.f32 %v424, 0.2
        %v433 = vmul.f32 %v425, 0.2
        %v434 = vsel %vm426, %v422, %v430
        %v435 = vsel %vm427, %v423, %v431
        %v436 = vsel %vm428, %v424, %v432
        %v437 = vsel %vm429, %v425, %v433
        %442 = vrot.lane.b32.xlu0 %v434, 3
        %v443 = vpop.permute.xlu0 %442
        %444 = vrot.lane.b32.xlu0 %v435, 3
        %v445 = vpop.permute.xlu0 %444
        %446 = vrot.lane.b32.xlu0 %v436, 3
        %v447 = vpop.permute.xlu0 %446
        %448 = vrot.lane.b32.xlu0 %v437, 3
        %v449 = vpop.permute.xlu0 %448
        %454 = vst.msk [vmem:[#allocation2] sm:$0xff] %vm261, %v443
        %455 = vst.msk [vmem:[#allocation2 + $0x8] sm:$0xff] %vm261, %v445
        %456 = vst.msk [vmem:[#allocation2 + $0x10] sm:$0xff] %vm261, %v447
        %457 = vst.msk [vmem:[#allocation2 + $0x18] sm:$0xff] %vm261, %v449
        %v458 = vld [vmem:[#allocation2] sm:$0xff]
        %v459 = vld [vmem:[#allocation2 + $0x8] sm:$0xff]
        %v460 = vld [vmem:[#allocation2 + $0x10] sm:$0xff]
        %v461 = vld [vmem:[#allocation2 + $0x18] sm:$0xff]
        %466 = vrot.lane.b32.xlu0 %v458, 125
        %v467 = vpop.permute.xlu0 %466
        %468 = vrot.lane.b32.xlu0 %v459, 125
        %v469 = vpop.permute.xlu0 %468
        %470 = vrot.lane.b32.xlu0 %v460, 125
        %v471 = vpop.permute.xlu0 %470
        %472 = vrot.lane.b32.xlu0 %v461, 125
        %v473 = vpop.permute.xlu0 %472
        %478 = vrot.lane.b32.xlu0 %v458, 122
        %v479 = vpop.permute.xlu0 %478
        %480 = vrot.lane.b32.xlu0 %v459, 122
        %v481 = vpop.permute.xlu0 %480
        %482 = vrot.lane.b32.xlu0 %v460, 122
        %v483 = vpop.permute.xlu0 %482
        %484 = vrot.lane.b32.xlu0 %v461, 122
        %v485 = vpop.permute.xlu0 %484
        %s490 = scalar_lea.vmem [#allocation6], 32
        %v491 = vld [vmem:[%s490] sm:$0xff]
        %v492 = vld [vmem:[%s490 + $0x8] sm:$0xff]
        %v493 = vld [vmem:[%s490 + $0x10] sm:$0xff]
        %v494 = vld [vmem:[%s490 + $0x18] sm:$0xff]
        %v496 = vsel %vm322, %v491, 0
        %v499 = vsel %vm322, %v492, 0
        %v502 = vsel %vm322, %v493, 0
        %v505 = vsel %vm322, %v494, 0
        %507 = vmatpush.msra.mxu0 0.0
        %508 = vmatpush.msra.mxu0 0.0
        %509 = vmatpush.msra.mxu0 0.0
        %510 = vmatpush.msra.mxu0 0.0
        %511 = vmatpush.msra.mxu0 %v485
        %512 = vmatpush.msra.mxu0 %v483
        %513 = vmatpush.msra.mxu0 %v481
        %514 = vmatpush.msra.mxu0 %v479
        %515 = vmatpush.msra.mxu0 %v473
        %516 = vmatpush.msra.mxu0 %v471
        %517 = vmatpush.msra.mxu0 %v469
        %518 = vmatpush.msra.mxu0 %v467
        %519 = vmatpush.msra.mxu0 %v461
        %520 = vmatpush.msra.mxu0 %v460
        %521 = vmatpush.msra.mxu0 %v459
        %522 = vmatpush.msra.mxu0 %v458
        %523 = vmatmul.f32.gmra.mxu0 %v496
        %v524 = vpop.f32.mrf.mxu0
        %v525 = vadd.f32 0.0, %v524
        %526 = vmatmul.f32.gmra.mxu0 %v499
        %v527 = vpop.f32.mrf.mxu0
        %v528 = vadd.f32 0.0, %v527
        %529 = vmatmul.f32.gmra.mxu0 %v502
        %v530 = vpop.f32.mrf.mxu0
        %v531 = vadd.f32 0.0, %v530
        %532 = vmatmul.f32.gmra.mxu0 %v505
        %v533 = vpop.f32.mrf.mxu0
        %v534 = vadd.f32 0.0, %v533
        %535 = vdwg.mxu0
        %vm536 = vcmp.gt.f32.partialorder %v525, 0.0
        %vm537 = vcmp.gt.f32.partialorder %v528, 0.0
        %vm538 = vcmp.gt.f32.partialorder %v531, 0.0
        %vm539 = vcmp.gt.f32.partialorder %v534, 0.0
        %v540 = vmul.f32 %v525, 0.2
        %v541 = vmul.f32 %v528, 0.2
        %v542 = vmul.f32 %v531, 0.2
        %v543 = vmul.f32 %v534, 0.2
        %v544 = vsel %vm536, %v525, %v540
        %v545 = vsel %vm537, %v528, %v541
        %v546 = vsel %vm538, %v531, %v542
        %v547 = vsel %vm539, %v534, %v543
        %s548 = scalar_lea.vmem [#allocation8], 32
        %v549 = vld [vmem:[%s548] sm:$0xff]
        %v550 = vld [vmem:[%s548 + $0x8] sm:$0xff]
        %v551 = vld [vmem:[%s548 + $0x10] sm:$0xff]
        %v552 = vld [vmem:[%s548 + $0x18] sm:$0xff]
        %v554 = vsel %vm380, %v549, 0
        %v557 = vsel %vm380, %v550, 0
        %v560 = vsel %vm380, %v551, 0
        %v563 = vsel %vm380, %v552, 0
        %565 = vmatpush.msra.mxu0 0.0
        %566 = vmatpush.msra.mxu0 0.0
        %567 = vmatpush.msra.mxu0 0.0
        %568 = vmatpush.msra.mxu0 0.0
        %569 = vmatpush.msra.mxu0 0.0
        %570 = vmatpush.msra.mxu0 0.0
        %571 = vmatpush.msra.mxu0 0.0
        %572 = vmatpush.msra.mxu0 0.0
        %573 = vmatpush.msra.mxu0 0.0
        %574 = vmatpush.msra.mxu0 0.0
        %575 = vmatpush.msra.mxu0 0.0
        %576 = vmatpush.msra.mxu0 0.0
        %577 = vmatpush.msra.mxu0 %v547
        %578 = vmatpush.msra.mxu0 %v546
        %579 = vmatpush.msra.mxu0 %v545
        %580 = vmatpush.msra.mxu0 %v544
        %581 = vmatmul.f32.gmra.mxu0 %v554
        %v582 = vpop.f32.mrf.mxu0
        %v583 = vadd.f32 0.0, %v582
        %584 = vmatmul.f32.gmra.mxu0 %v557
        %v585 = vpop.f32.mrf.mxu0
        %v586 = vadd.f32 0.0, %v585
        %587 = vmatmul.f32.gmra.mxu0 %v560
        %v588 = vpop.f32.mrf.mxu0
        %v589 = vadd.f32 0.0, %v588
        %590 = vmatmul.f32.gmra.mxu0 %v563
        %v591 = vpop.f32.mrf.mxu0
        %v592 = vadd.f32 0.0, %v591
        %593 = vdwg.mxu0
        %v594 = vadd.f32 %v422, %v583
        %v595 = vadd.f32 %v423, %v586
        %v596 = vadd.f32 %v424, %v589
        %v597 = vadd.f32 %v425, %v592
        %vm598 = vcmask 523264
        %599 = vst.msk [vmem:[%s223] sm:$0xff] %vm598, %v594
        %600 = vst.msk [vmem:[%s223 + $0x8] sm:$0xff] %vm598, %v595
        %601 = vst.msk [vmem:[%s223 + $0x10] sm:$0xff] %vm598, %v596
        %602 = vst.msk [vmem:[%s223 + $0x18] sm:$0xff] %vm598, %v597
        %s603 = sand.u32 %s97, 1
        %s604 = scalar_lea.sflag [#allocation5], %s603
        %s605 = sand.u32 %s97, 1
        %s606 = smul.addr %s605, 32
        %s607 = scalar_lea.vmem [#allocation9], %s606
        // Predicated region
        $region45: #{tpu_custom_call.1} parent=31 // pred_check
          %p608 = pneg %p107
        $region46: #{tpu_custom_call.1} parent=31 // pred_check_branch
          %610 = sbr.rel (%p608) target = $region48
        $region47: #{tpu_custom_call.1} parent=31 // pred_region
          %612 = vsyncadd %s604, 0
          %s613 = smul.addr %s21, 4
          %s614 = smul.addr %s613, 8
          %s615 = scalar_lea.hbm %s3, %s614
          %s616 = sshll.u32 %s607, 4
          %s617 = int_to_ptr.vmem [resolvable:$true] %s616
          %s618 = sshll.u32 %s615, 4
          %s619 = int_to_ptr.hbm [resolvable:$true] %s618
          %624 = dma.vmem_to_hbm [thread:$0]  %s617, 512, %s619, %s604, 128, 128, 8
        $region48: #{tpu_custom_call.1} parent=31 // pred_fallthru
          _
      $region32: #{tpu_custom_call.1} parent=5 // pred_fallthru
        _
      %p625 = scmp.le.s32.totalorder 2, %s16
      // Predicated region
      $region49: #{tpu_custom_call.1} parent=5 // pred_check
        %p626 = pneg %p625
      $region50: #{tpu_custom_call.1} parent=5 // pred_check_branch
        %628 = sbr.rel (%p626) target = $region52
      $region51: #{tpu_custom_call.1} parent=5 // pred_region
        %s629 = ssub.s32 %s16, 2
        // Predicated region
        $region53: #{tpu_custom_call.1} parent=51 // pred_check
          %p630 = pneg %p113
        $region54: #{tpu_custom_call.1} parent=51 // pred_check_branch
          %632 = sbr.rel (%p630) target = $region56
        $region55: #{tpu_custom_call.1} parent=51 // pred_region
          %s633 = sand.u32 %s98, 1
          %s634 = scalar_lea.sflag [#allocation5], %s633
          %s635 = sand.u32 %s98, 1
          %s636 = smul.addr %s635, 32
          %s637 = scalar_lea.vmem [#allocation9], %s636
          %639 = dma.done %s634, 512
        $region56: #{tpu_custom_call.1} parent=51 // pred_fallthru
          _
      $region52: #{tpu_custom_call.1} parent=5 // pred_fallthru
        _
    $region6: #{tpu_custom_call.1} parent=1 // loop_footer
      %s20 = sadd.s32 1, %s16
    $region7: #{tpu_custom_call.1} parent=1 // loop_footer_branch
      %15 = sbr.rel target = $region3
    $region8: #{tpu_custom_call.1} parent=1 // loop_exit
      _
    %640 = vsyncpa [#allocation4], 1
    %s641 = scalar_lea.sflag [#allocation4], 1
    %642 = vsyncpa %s641, 1
    %643 = vsyncpa [#allocation7], 1
    %644 = vsyncpa [#allocation5], 1
    %s645 = scalar_lea.sflag [#allocation5], 1
    %646 = vsyncpa %s645, 1

</llo_original>
